<compile_context>
chip_gen: v5e
topology: v5e:2x2
jax: 0.10.0
libtpu: 0.0.40
codegen_flags: <defaults>
</compile_context>

<pallas_src>
import numpy as np
import jax
import jax.numpy as jnp
from jax.experimental import pallas as pl
from jax.experimental.pallas import tpu as pltpu


def _round_up(a, m):
    return (a + m - 1) // m * m


def _instance_conv1d_kernel(xp_ref, xc_ref, xn_ref, sp_ref, sc_ref, sn_ref,
                            w_ref, b_ref, o_ref):
    """Depthwise 'same' conv along the lane (packed-time) axis of one tile.

    Lane-dense layout: channels on sublanes, packed time on lanes.
      xp_ref: (C, HALO)  left-halo lanes (tail of previous tile)
      xc_ref: (C, TILE)  current tile
      xn_ref: (C, HALO)  right-halo lanes (head of next tile)
      sp/sc/sn: (1, HALO/TILE/HALO) int32 per-position segment id
      w_ref : (C, K) depthwise taps (f32); b_ref: (C, 1) bias (f32)
      o_ref : (C, TILE)
    """
    C, TILE = xc_ref.shape
    HALO = xp_ref.shape[1]
    K = w_ref.shape[1]
    left = (K - 1) // 2                       # PyTorch padding='same' split

    i = pl.program_id(0)
    n = pl.num_programs(0)

    sid = sc_ref[...]
    # Halo blocks at the grid edges are clamped duplicates of in-range blocks;
    # give them a sentinel segment id so they can never be a valid conv source.
    s_prev = jnp.where(i > 0, sp_ref[...], -1)
    s_next = jnp.where(i < n - 1, sn_ref[...], -1)

    w = w_ref[...].astype(jnp.float32)        # (C, K)

    # Center tap: trivially same segment inside the tile -> no mask, no slab slice.
    acc = xc_ref[...].astype(jnp.float32) * w[:, left:left + 1]

    if K > 1:
        # Halo'd slabs stay in the input dtype; only the TILE-wide window of each
        # tap is upcast.  Direct static slices: the window never wraps, no roll.
        x_pad = jnp.concatenate([xp_ref[...], xc_ref[...], xn_ref[...]], axis=1)
        s_pad = jnp.concatenate([s_prev, sid, s_next], axis=1)
        for k in range(K):                    # static unroll over taps (VPU fma)
            d = k - left
            if d == 0:
                continue
            lo = HALO + d
            xs = x_pad[:, lo:lo + TILE].astype(jnp.float32)                # (C, TILE)
            mask = (s_pad[:, lo:lo + TILE] == sid).astype(jnp.float32)     # (1, TILE)
            acc = acc + xs * mask * w[:, k:k + 1]

    # Bias folded into the epilogue (no materialized init broadcast).
    o_ref[...] = (acc + b_ref[...].astype(jnp.float32)).astype(o_ref.dtype)


def instance_conv1d(x, weight, bias, lengths, *, channel_major=False,
                    max_tile_t=None, vmem_budget_bytes=20 * 1024 * 1024):
    """Depthwise (groups=C) Conv1d, padding='same', applied per packed segment.

    x:       (T, C) packed rows (time major), or (C, T) if channel_major=True.
             channel_major avoids the wrapper-side transpose passes entirely.
    weight:  (C, 1, K) torch Conv1d weight layout
    bias:    (C,)
    lengths: host-known per-instance segment lengths, sum(lengths) == T
    """
    if channel_major:
        C, T = x.shape
        x_ct = x
    else:
        T, C = x.shape
        # TODO(synk): keep the surrounding model channel-major to drop this pass.
        x_ct = jnp.transpose(x)

    K = int(weight.shape[-1])
    lengths = [int(l) for l in lengths]
    assert sum(lengths) == T

    left = (K - 1) // 2
    right = (K - 1) - left
    HALO = _round_up(max(left, right, 1), 128)        # lane halo, multiple of 128

    isz = jnp.dtype(x.dtype).itemsize
    T_ceil = _round_up(T, HALO)

    # ---- derive TILE from a VMEM budget (largest multiple of HALO that fits) ----
    def vmem_est(tile):
        W = tile + 2 * HALO
        b = 2 * (C * W * isz + W * 4)       # double-buffered inputs (x + seg-id streams)
        b += 2 * C * tile * isz             # double-buffered output
        b += C * W * isz + W * 4            # concatenated halo'd slabs
        b += 3 * C * tile * 4               # f32 accumulator + per-tap temporaries
        b += (C * K + C) * 4                # weights + bias
        return b

    cap = 64 * 1024 if max_tile_t is None else _round_up(int(max_tile_t), HALO)
    cap = max(min(cap, T_ceil), HALO)
    TILE = HALO
    while TILE + HALO <= cap and vmem_est(TILE + HALO) <= vmem_budget_bytes:
        TILE += HALO

    T_pad = _round_up(T, TILE)
    n_tiles = T_pad // TILE
    n_hblk = T_pad // HALO
    Rt = TILE // HALO

    # Per-position segment id; padded tail gets -1 so it never feeds a real output.
    sid_np = np.full((1, T_pad), -1, np.int32)
    off = 0
    for s, L in enumerate(lengths):
        sid_np[0, off:off + L] = s
        off += L
    sid = jnp.asarray(sid_np)

    xt = jnp.pad(x_ct, ((0, 0), (0, T_pad - T)))                 # (C, T_pad)
    w_ck = jnp.asarray(weight).reshape(C, K).astype(jnp.float32)
    b_c1 = jnp.asarray(bias).reshape(C, 1).astype(jnp.float32)

    bytes_accessed = (
        2 * T_pad * C * isz                       # x in + out
        + 2 * HALO * C * isz * n_tiles            # x halo re-reads
        + (T_pad + 2 * HALO * n_tiles) * 4        # segment ids (+ halos)
        + (C * K + C) * 4)                        # weights + bias
    cost = pl.CostEstimate(flops=2 * T_pad * C * K, transcendentals=0,
                           bytes_accessed=bytes_accessed)

    prev_map = lambda i: (0, jnp.maximum(i * Rt - 1, 0))
    cur_map = lambda i: (0, i)
    next_map = lambda i: (0, jnp.minimum((i + 1) * Rt, n_hblk - 1))

    vmem_limit = int(max(32 << 20, min(vmem_est(TILE) + (8 << 20), 56 << 20)))

    out_t = pl.pallas_call(
        _instance_conv1d_kernel,
        out_shape=jax.ShapeDtypeStruct((C, T_pad), x.dtype),
        grid_spec=pltpu.PrefetchScalarGridSpec(
            num_scalar_prefetch=0,
            grid=(n_tiles,),
            in_specs=[
                pl.BlockSpec((C, HALO), prev_map),    # x left halo
                pl.BlockSpec((C, TILE), cur_map),     # x current tile
                pl.BlockSpec((C, HALO), next_map),    # x right halo
                pl.BlockSpec((1, HALO), prev_map),    # seg-id left halo
                pl.BlockSpec((1, TILE), cur_map),     # seg-id current tile
                pl.BlockSpec((1, HALO), next_map),    # seg-id right halo
                pl.BlockSpec((C, K), lambda i: (0, 0)),
                pl.BlockSpec((C, 1), lambda i: (0, 0)),
            ],
            out_specs=pl.BlockSpec((C, TILE), cur_map),
        ),
        compiler_params=pltpu.CompilerParams(
            dimension_semantics=("parallel",),
            vmem_limit_bytes=vmem_limit),
        cost_estimate=cost,
    )(xt, xt, xt, sid, sid, sid, w_ck, b_c1)

    out_t = out_t[:, :T]
    return out_t if channel_major else jnp.transpose(out_t)


def reference_numpy(x, weight, bias, lengths):
    """Pure-numpy reference matching torch semantics (per-segment 'same' conv)."""
    x = np.asarray(x, np.float32)
    w = np.asarray(weight, np.float32)[:, 0, :]        # (C, K)
    b = np.asarray(bias, np.float32)
    T, C = x.shape
    K = w.shape[1]
    left = (K - 1) // 2
    right = (K - 1) - left
    out = np.zeros((T, C), np.float32)
    off = 0
    for L in lengths:
        seg = x[off:off + L]
        segp = np.concatenate(
            [np.zeros((left, C), np.float32), seg, np.zeros((right, C), np.float32)], 0)
        for t in range(L):
            out[off + t] = b + np.sum(w.T * segp[t:t + K], axis=0)
        off += L
    return out


if __name__ == "__main__":
    in_features = 8
    kernel_size = 3
    # Segments deliberately straddle 128-lane tile boundaries to exercise halos.
    lengths = [70, 113, 46, 71]
    T = sum(lengths)                 # 300 -> padded to 384

    key = jax.random.PRNGKey(0)
    kx, kw, kb = jax.random.split(key, 3)
    x = jax.random.normal(kx, (T, in_features), dtype=jnp.float32)
    # Torch Conv1d parameter shapes: (C_out, C_in/groups, K) and (C_out,)
    weight = jax.random.normal(kw, (in_features, 1, kernel_size), dtype=jnp.float32) * 0.1
    bias = jax.random.normal(kb, (in_features,), dtype=jnp.float32) * 0.1

    ref = reference_numpy(np.asarray(x), np.asarray(weight), np.asarray(bias), lengths)

    # Default: VMEM-budget-derived tile (whole packed sequence in one step here).
    out = jax.block_until_ready(instance_conv1d(x, weight, bias, lengths))
    np.testing.assert_allclose(np.asarray(out), ref, rtol=1e-5, atol=1e-5)

    # Force a small tile so the grid has multiple steps and the halo path runs.
    out_small = jax.block_until_ready(
        instance_conv1d(x, weight, bias, lengths, max_tile_t=128))
    np.testing.assert_allclose(np.asarray(out_small), ref, rtol=1e-5, atol=1e-5)

    print("KERNEL_OK")
</pallas_src>

<mosaic_0001>
module attributes {stable_mosaic.version = 11 : i64} {
  func.func @_instance_conv1d_kernel(%arg0: i32, %arg1: memref<8x128xf32, #tpu.memory_space<vmem>>, %arg2: memref<8x384xf32, #tpu.memory_space<vmem>>, %arg3: memref<8x128xf32, #tpu.memory_space<vmem>>, %arg4: memref<1x128xi32, #tpu.memory_space<vmem>>, %arg5: memref<1x384xi32, #tpu.memory_space<vmem>>, %arg6: memref<1x128xi32, #tpu.memory_space<vmem>>, %arg7: memref<8x3xf32, #tpu.memory_space<vmem>>, %arg8: memref<8x1xf32, #tpu.memory_space<vmem>>, %arg9: memref<8x384xf32, #tpu.memory_space<vmem>>) attributes {dimension_semantics = [#tpu.dimension_semantics<parallel>], iteration_bounds = array<i64: 1>, scalar_prefetch = 0 : i64, scratch_operands = 0 : i64, tpu.core_type = #tpu.core_type<tc>, window_params = [{transform_indices = @transform_0, window_bounds = array<i64: 8, 128>}, {transform_indices = @transform_1, window_bounds = array<i64: 8, 384>}, {transform_indices = @transform_2, window_bounds = array<i64: 8, 128>}, {transform_indices = @transform_3, window_bounds = array<i64: 1, 128>}, {transform_indices = @transform_4, window_bounds = array<i64: 1, 384>}, {transform_indices = @transform_5, window_bounds = array<i64: 1, 128>}, {pipeline_mode = #tpu.pipeline_mode<synchronous>, transform_indices = @transform_6, window_bounds = array<i64: 8, 3>}, {pipeline_mode = #tpu.pipeline_mode<synchronous>, transform_indices = @transform_7, window_bounds = array<i64: 8, 1>}, {transform_indices = @transform_8, window_bounds = array<i64: 8, 384>}]} {
    %c0 = arith.constant 0 : index
    %c0_0 = arith.constant 0 : index
    %0 = vector.load %arg5[%c0, %c0_0] : memref<1x384xi32, #tpu.memory_space<vmem>>, vector<1x384xi32>
    %c0_i32 = arith.constant 0 : i32
    %1 = arith.cmpi sgt, %arg0, %c0_i32 : i32
    %c0_1 = arith.constant 0 : index
    %c0_2 = arith.constant 0 : index
    %2 = vector.load %arg4[%c0_1, %c0_2] : memref<1x128xi32, #tpu.memory_space<vmem>>, vector<1x128xi32>
    %c-1_i32 = arith.constant -1 : i32
    %3 = vector.broadcast %c-1_i32 : i32 to vector<1x128xi32>
    %4 = arith.select %1, %2, %3 : vector<1x128xi32>
    %c0_i32_3 = arith.constant 0 : i32
    %5 = arith.cmpi slt, %arg0, %c0_i32_3 : i32
    %c0_4 = arith.constant 0 : index
    %c0_5 = arith.constant 0 : index
    %6 = vector.load %arg6[%c0_4, %c0_5] : memref<1x128xi32, #tpu.memory_space<vmem>>, vector<1x128xi32>
    %c-1_i32_6 = arith.constant -1 : i32
    %7 = vector.broadcast %c-1_i32_6 : i32 to vector<1x128xi32>
    %8 = arith.select %5, %6, %7 : vector<1x128xi32>
    %c0_7 = arith.constant 0 : index
    %c0_8 = arith.constant 0 : index
    %9 = vector.load %arg7[%c0_7, %c0_8] : memref<8x3xf32, #tpu.memory_space<vmem>>, vector<8x3xf32>
    %c0_9 = arith.constant 0 : index
    %c0_10 = arith.constant 0 : index
    %10 = vector.load %arg2[%c0_9, %c0_10] : memref<8x384xf32, #tpu.memory_space<vmem>>, vector<8x384xf32>
    %11 = vector.extract_strided_slice %9 {offsets = [0, 1], sizes = [8, 1], strides = [1, 1]} : vector<8x3xf32> to vector<8x1xf32>
    %12 = vector.broadcast %11 : vector<8x1xf32> to vector<8x384xf32>
    %13 = arith.mulf %10, %12 : vector<8x384xf32>
    %c0_11 = arith.constant 0 : index
    %c0_12 = arith.constant 0 : index
    %14 = vector.load %arg1[%c0_11, %c0_12] : memref<8x128xf32, #tpu.memory_space<vmem>>, vector<8x128xf32>
    %c0_13 = arith.constant 0 : index
    %c0_14 = arith.constant 0 : index
    %15 = vector.load %arg2[%c0_13, %c0_14] : memref<8x384xf32, #tpu.memory_space<vmem>>, vector<8x384xf32>
    %c0_15 = arith.constant 0 : index
    %c0_16 = arith.constant 0 : index
    %16 = vector.load %arg3[%c0_15, %c0_16] : memref<8x128xf32, #tpu.memory_space<vmem>>, vector<8x128xf32>
    %17 = tpu.concatenate %14, %15, %16 in 1 : vector<8x128xf32>, vector<8x384xf32>, vector<8x128xf32> -> vector<8x640xf32>
    %18 = tpu.concatenate %4, %0, %8 in 1 : vector<1x128xi32>, vector<1x384xi32>, vector<1x128xi32> -> vector<1x640xi32>
    %19 = vector.extract_strided_slice %17 {offsets = [0, 127], sizes = [8, 384], strides = [1, 1]} : vector<8x640xf32> to vector<8x384xf32>
    %20 = vector.extract_strided_slice %18 {offsets = [0, 127], sizes = [1, 384], strides = [1, 1]} : vector<1x640xi32> to vector<1x384xi32>
    %21 = arith.cmpi eq, %20, %0 : vector<1x384xi32>
    %22 = arith.extui %21 : vector<1x384xi1> to vector<1x384xi32>
    %23 = arith.sitofp %22 : vector<1x384xi32> to vector<1x384xf32>
    %24 = vector.broadcast %23 : vector<1x384xf32> to vector<8x384xf32>
    %25 = arith.mulf %19, %24 : vector<8x384xf32>
    %26 = vector.extract_strided_slice %9 {offsets = [0, 0], sizes = [8, 1], strides = [1, 1]} : vector<8x3xf32> to vector<8x1xf32>
    %27 = vector.broadcast %26 : vector<8x1xf32> to vector<8x384xf32>
    %28 = arith.mulf %25, %27 : vector<8x384xf32>
    %29 = arith.addf %13, %28 : vector<8x384xf32>
    %30 = vector.extract_strided_slice %17 {offsets = [0, 129], sizes = [8, 384], strides = [1, 1]} : vector<8x640xf32> to vector<8x384xf32>
    %31 = vector.extract_strided_slice %18 {offsets = [0, 129], sizes = [1, 384], strides = [1, 1]} : vector<1x640xi32> to vector<1x384xi32>
    %32 = arith.cmpi eq, %31, %0 : vector<1x384xi32>
    %33 = arith.extui %32 : vector<1x384xi1> to vector<1x384xi32>
    %34 = arith.sitofp %33 : vector<1x384xi32> to vector<1x384xf32>
    %35 = vector.broadcast %34 : vector<1x384xf32> to vector<8x384xf32>
    %36 = arith.mulf %30, %35 : vector<8x384xf32>
    %37 = vector.extract_strided_slice %9 {offsets = [0, 2], sizes = [8, 1], strides = [1, 1]} : vector<8x3xf32> to vector<8x1xf32>
    %38 = vector.broadcast %37 : vector<8x1xf32> to vector<8x384xf32>
    %39 = arith.mulf %36, %38 : vector<8x384xf32>
    %40 = arith.addf %29, %39 : vector<8x384xf32>
    %c0_17 = arith.constant 0 : index
    %c0_18 = arith.constant 0 : index
    %41 = vector.load %arg8[%c0_17, %c0_18] : memref<8x1xf32, #tpu.memory_space<vmem>>, vector<8x1xf32>
    %42 = vector.broadcast %41 : vector<8x1xf32> to vector<8x384xf32>
    %43 = arith.addf %40, %42 : vector<8x384xf32>
    %c0_19 = arith.constant 0 : index
    %c0_20 = arith.constant 0 : index
    %44 = vector.load %arg9[%c0_19, %c0_20] : memref<8x384xf32, #tpu.memory_space<vmem>>, vector<8x384xf32>
    tpu.vector_store %arg9[%c0_19, %c0_20], %43 {strides = array<i32>} : memref<8x384xf32, #tpu.memory_space<vmem>>, vector<8x384xf32>,
    return
  }
  func.func @transform_0(%arg0: i32) -> (i32, i32) {
    %c3_i32 = arith.constant 3 : i32
    %0 = arith.muli %arg0, %c3_i32 : i32
    %c1_i32 = arith.constant 1 : i32
    %1 = arith.subi %0, %c1_i32 : i32
    %c0_i32 = arith.constant 0 : i32
    %2 = arith.maxsi %1, %c0_i32 : i32
    %c0_i32_0 = arith.constant 0 : i32
    %c0_i32_1 = arith.constant 0 : i32
    return %c0_i32_0, %2 : i32, i32
  }
  func.func @transform_1(%arg0: i32) -> (i32, i32) {
    %c0_i32 = arith.constant 0 : i32
    %c0_i32_0 = arith.constant 0 : i32
    return %c0_i32, %arg0 : i32, i32
  }
  func.func @transform_2(%arg0: i32) -> (i32, i32) {
    %c1_i32 = arith.constant 1 : i32
    %0 = arith.addi %arg0, %c1_i32 : i32
    %c3_i32 = arith.constant 3 : i32
    %1 = arith.muli %0, %c3_i32 : i32
    %c2_i32 = arith.constant 2 : i32
    %2 = arith.minsi %1, %c2_i32 : i32
    %c0_i32 = arith.constant 0 : i32
    %c0_i32_0 = arith.constant 0 : i32
    return %c0_i32, %2 : i32, i32
  }
  func.func @transform_3(%arg0: i32) -> (i32, i32) {
    %c3_i32 = arith.constant 3 : i32
    %0 = arith.muli %arg0, %c3_i32 : i32
    %c1_i32 = arith.constant 1 : i32
    %1 = arith.subi %0, %c1_i32 : i32
    %c0_i32 = arith.constant 0 : i32
    %2 = arith.maxsi %1, %c0_i32 : i32
    %c0_i32_0 = arith.constant 0 : i32
    %c0_i32_1 = arith.constant 0 : i32
    return %c0_i32_0, %2 : i32, i32
  }
  func.func @transform_4(%arg0: i32) -> (i32, i32) {
    %c0_i32 = arith.constant 0 : i32
    %c0_i32_0 = arith.constant 0 : i32
    return %c0_i32, %arg0 : i32, i32
  }
  func.func @transform_5(%arg0: i32) -> (i32, i32) {
    %c1_i32 = arith.constant 1 : i32
    %0 = arith.addi %arg0, %c1_i32 : i32
    %c3_i32 = arith.constant 3 : i32
    %1 = arith.muli %0, %c3_i32 : i32
    %c2_i32 = arith.constant 2 : i32
    %2 = arith.minsi %1, %c2_i32 : i32
    %c0_i32 = arith.constant 0 : i32
    %c0_i32_0 = arith.constant 0 : i32
    return %c0_i32, %2 : i32, i32
  }
  func.func @transform_6(%arg0: i32) -> (i32, i32) {
    %c0_i32 = arith.constant 0 : i32
    %c0_i32_0 = arith.constant 0 : i32
    %c0_i32_1 = arith.constant 0 : i32
    return %c0_i32, %c0_i32_0 : i32, i32
  }
  func.func @transform_7(%arg0: i32) -> (i32, i32) {
    %c0_i32 = arith.constant 0 : i32
    %c0_i32_0 = arith.constant 0 : i32
    %c0_i32_1 = arith.constant 0 : i32
    return %c0_i32, %c0_i32_0 : i32, i32
  }
  func.func @transform_8(%arg0: i32) -> (i32, i32) {
    %c0_i32 = arith.constant 0 : i32
    %c0_i32_0 = arith.constant 0 : i32
    return %c0_i32, %arg0 : i32, i32
  }
}

</mosaic_0001>

<llo_original>
// kernel: tpu_custom_call.1
$region0: #{tpu_custom_call.1}
  #allocation0 [shape = 'u32[]', space=smem, size = 0x4, offset = 0x4, fixed_abs, tag = 'smem constant byte address 0x4 - core index']
  #allocation1 [shape = 'u32[72,128]{1,0:T(1,128)}', space=vmem, size = 0x9000, scoped, tag = 'internal scratch']
  %s0 = inlined_call_operand.hbm [shape: f32[8,384], index: 0, kind: input, shape index: {}]
  %s1 = inlined_call_operand.hbm [shape: f32[8,384], index: 1, kind: input, shape index: {}]
  %s2 = inlined_call_operand.hbm [shape: f32[8,384], index: 2, kind: input, shape index: {}]
  %s3 = inlined_call_operand.vmem [shape: s32[1,384], index: 3, kind: input, shape index: {}]
  %s4 = inlined_call_operand.vmem [shape: s32[1,384], index: 4, kind: input, shape index: {}]
  %s5 = inlined_call_operand.vmem [shape: s32[1,384], index: 5, kind: input, shape index: {}]
  %s6 = inlined_call_operand.vmem [shape: f32[8,3], index: 6, kind: input, shape index: {}]
  %s7 = inlined_call_operand.vmem [shape: f32[8,1], index: 7, kind: input, shape index: {}]
  %s8 = inlined_call_operand.hbm [shape: f32[8,384], index: 8, kind: output, shape index: {}]
  %s9 = sld [smem:[#allocation0]]
  $region54: #{tpu_custom_call.1} parent=0
    _
  %s11 = ssub.s32 1, %s9
  %s12 = scalar_select 0, %s11, %s9
  $region1: #{tpu_custom_call.1} parent=0
    #allocation2 [shape = 'u8[4096]{0}', space=vmem, size = 0x1000, scoped, tag = 'input window, operand 0, single buffered']
    #allocation3 [shape = 's32[1]{0}', space=sflag, size = 0x4, scoped, tag = 'scoped memory for tpu_custom_call.1']
    #allocation4 [shape = 's32[1]{0}', space=sflag, size = 0x4, scoped, tag = 'scoped memory for tpu_custom_call.1']
    #allocation5 [shape = 'u8[12288]{0}', space=vmem, size = 0x3000, scoped, tag = 'input window, operand 1, single buffered']
    #allocation6 [shape = 's32[1]{0}', space=sflag, size = 0x4, scoped, tag = 'scoped memory for tpu_custom_call.1']
    #allocation7 [shape = 'u8[4096]{0}', space=vmem, size = 0x1000, scoped, tag = 'input window, operand 2, single buffered']
    #allocation8 [shape = 'u8[12288]{0}', space=vmem, size = 0x3000, scoped, tag = 'output window, operand 0, single buffered']
    %13 = vsyncpa [#allocation3], 0
    %14 = vsyncpa [#allocation6], 0
    %15 = vsyncpa [#allocation4], 0
    // Predicated region
    $region2: #{tpu_custom_call.1} parent=1 // pred_check
      _
    $region3: #{tpu_custom_call.1} parent=1 // pred_check_branch
      %17 = sbr.rel (0) target = $region5
    $region4: #{tpu_custom_call.1} parent=1 // pred_region
      %s18 = smul.u32 0, 3
      %s19 = ssub.s32 %s18, 1
      %p20 = scmp.gt.s32.totalorder %s19, 0
      %s21 = scalar_select %p20, %s19, 0
      %23 = vsyncadd [#allocation3], 0
      %s24 = smul.addr %s21, 8
      %s25 = scalar_lea.hbm %s0, %s24
      %s27 = sshll.u32 %s25, 4
      %s28 = int_to_ptr.hbm [resolvable:$true] %s27
      %s29 = sshll.u32 [#allocation2], 4
      %s30 = int_to_ptr.vmem [resolvable:$true] %s29
      %32 = dma.hbm_to_vmem [thread:$0]  %s28, 128, %s30, [#allocation3]
    $region5: #{tpu_custom_call.1} parent=1 // pred_fallthru
      _
    // Predicated region
    $region6: #{tpu_custom_call.1} parent=1 // pred_check
      _
    $region7: #{tpu_custom_call.1} parent=1 // pred_check_branch
      %34 = sbr.rel (0) target = $region9
    $region8: #{tpu_custom_call.1} parent=1 // pred_region
      %36 = vsyncadd [#allocation6], 0
      %s38 = sshll.u32 %s1, 4
      %s39 = int_to_ptr.hbm [resolvable:$true] %s38
      %s40 = sshll.u32 [#allocation5], 4
      %s41 = int_to_ptr.vmem [resolvable:$true] %s40
      %43 = dma.hbm_to_vmem [thread:$0]  %s39, 384, %s41, [#allocation6]
    $region9: #{tpu_custom_call.1} parent=1 // pred_fallthru
      _
    // Predicated region
    $region10: #{tpu_custom_call.1} parent=1 // pred_check
      _
    $region11: #{tpu_custom_call.1} parent=1 // pred_check_branch
      %45 = sbr.rel (0) target = $region13
    $region12: #{tpu_custom_call.1} parent=1 // pred_region
      %s46 = sadd.s32 0, 1
      %s47 = smul.u32 %s46, 3
      %p48 = scmp.lt.s32.totalorder %s47, 2
      %s49 = scalar_select %p48, %s47, 2
      %51 = vsyncadd [#allocation6], 0
      %s52 = smul.addr %s49, 8
      %s53 = scalar_lea.hbm %s2, %s52
      %s55 = sshll.u32 %s53, 4
      %s56 = int_to_ptr.hbm [resolvable:$true] %s55
      %s57 = sshll.u32 [#allocation7], 4
      %s58 = int_to_ptr.vmem [resolvable:$true] %s57
      %60 = dma.hbm_to_vmem [thread:$0]  %s56, 128, %s58, [#allocation6]
    $region13: #{tpu_custom_call.1} parent=1 // pred_fallthru
      _
    // Predicated region
    $region14: #{tpu_custom_call.1} parent=1 // pred_check
      _
    $region15: #{tpu_custom_call.1} parent=1 // pred_check_branch
      %62 = sbr.rel (0) target = $region17
    $region16: #{tpu_custom_call.1} parent=1 // pred_region
      %s63 = smul.u32 0, 3
      %s64 = ssub.s32 %s63, 1
      %p65 = scmp.gt.s32.totalorder %s64, 0
      %s66 = scalar_select %p65, %s64, 0
      %p67 = scmp.lt.s32.totalorder %s66, 2
      %s68 = scalar_select %p67, %s66, 2
      %s69 = scalar_lea.vmem %s3, %s68
      %s70 = smul.u32 0, 3
      %s71 = ssub.s32 %s70, 1
      %p72 = scmp.gt.s32.totalorder %s71, 0
      %s73 = scalar_select %p72, %s71, 0
    $region17: #{tpu_custom_call.1} parent=1 // pred_fallthru
      _
    // Predicated region
    $region18: #{tpu_custom_call.1} parent=1 // pred_check
      _
    $region19: #{tpu_custom_call.1} parent=1 // pred_check_branch
      %75 = sbr.rel (0) target = $region21
    $region20: #{tpu_custom_call.1} parent=1 // pred_region
      _
    $region21: #{tpu_custom_call.1} parent=1 // pred_fallthru
      _
    // Predicated region
    $region22: #{tpu_custom_call.1} parent=1 // pred_check
      _
    $region23: #{tpu_custom_call.1} parent=1 // pred_check_branch
      %77 = sbr.rel (0) target = $region25
    $region24: #{tpu_custom_call.1} parent=1 // pred_region
      %s78 = sadd.s32 0, 1
      %s79 = smul.u32 %s78, 3
      %p80 = scmp.lt.s32.totalorder %s79, 2
      %s81 = scalar_select %p80, %s79, 2
      %p82 = scmp.lt.s32.totalorder %s81, 2
      %s83 = scalar_select %p82, %s81, 2
      %s84 = scalar_lea.vmem %s5, %s83
      %s85 = sadd.s32 0, 1
      %s86 = smul.u32 %s85, 3
      %p87 = scmp.lt.s32.totalorder %s86, 2
      %s88 = scalar_select %p87, %s86, 2
    $region25: #{tpu_custom_call.1} parent=1 // pred_fallthru
      _
    // Predicated region
    $region26: #{tpu_custom_call.1} parent=1 // pred_check
      _
    $region27: #{tpu_custom_call.1} parent=1 // pred_check_branch
      %90 = sbr.rel (0) target = $region29
    $region28: #{tpu_custom_call.1} parent=1 // pred_region
      _
    $region29: #{tpu_custom_call.1} parent=1 // pred_fallthru
      _
    // Predicated region
    $region30: #{tpu_custom_call.1} parent=1 // pred_check
      _
    $region31: #{tpu_custom_call.1} parent=1 // pred_check_branch
      %92 = sbr.rel (0) target = $region33
    $region32: #{tpu_custom_call.1} parent=1 // pred_region
      _
    $region33: #{tpu_custom_call.1} parent=1 // pred_fallthru
      _
    // Predicated region
    $region34: #{tpu_custom_call.1} parent=1 // pred_check
      _
    $region35: #{tpu_custom_call.1} parent=1 // pred_check_branch
      %94 = sbr.rel (0) target = $region37
    $region36: #{tpu_custom_call.1} parent=1 // pred_region
      %96 = dma.done [#allocation3], 128
    $region37: #{tpu_custom_call.1} parent=1 // pred_fallthru
      _
    // Predicated region
    $region38: #{tpu_custom_call.1} parent=1 // pred_check
      _
    $region39: #{tpu_custom_call.1} parent=1 // pred_check_branch
      %98 = sbr.rel (0) target = $region41
    $region40: #{tpu_custom_call.1} parent=1 // pred_region
      %100 = dma.done [#allocation6], 384
    $region41: #{tpu_custom_call.1} parent=1 // pred_fallthru
      _
    // Predicated region
    $region42: #{tpu_custom_call.1} parent=1 // pred_check
      _
    $region43: #{tpu_custom_call.1} parent=1 // pred_check_branch
      %102 = sbr.rel (0) target = $region45
    $region44: #{tpu_custom_call.1} parent=1 // pred_region
      %104 = dma.done [#allocation6], 128
    $region45: #{tpu_custom_call.1} parent=1 // pred_fallthru
      _
    %s105 = smul.u32 0, 3
    %s106 = ssub.s32 %s105, 1
    %p107 = scmp.gt.s32.totalorder %s106, 0
    %s108 = scalar_select %p107, %s106, 0
    %p109 = scmp.lt.s32.totalorder %s108, 2
    %s110 = scalar_select %p109, %s108, 2
    %s111 = scalar_lea.vmem %s3, %s110
    %s112 = sadd.s32 0, 1
    %s113 = smul.u32 %s112, 3
    %p114 = scmp.lt.s32.totalorder %s113, 2
    %s115 = scalar_select %p114, %s113, 2
    %p116 = scmp.lt.s32.totalorder %s115, 2
    %s117 = scalar_select %p116, %s115, 2
    %s118 = scalar_lea.vmem %s5, %s117
    %s119 = smul.u32 0, 3
    %s120 = ssub.s32 %s119, 1
    %p121 = scmp.gt.s32.totalorder %s120, 0
    %s122 = scalar_select %p121, %s120, 0
    %s123 = sadd.s32 0, 1
    %s124 = smul.u32 %s123, 3
    %p125 = scmp.lt.s32.totalorder %s124, 2
    %s126 = scalar_select %p125, %s124, 2
    %s127 = smul.u32 0, 3
    %s128 = ssub.s32 %s127, 1
    %p129 = scmp.gt.s32.totalorder %s128, 0
    %s130 = scalar_select %p129, %s128, 0
    %p131 = scmp.lt.s32.totalorder %s130, 2
    %s132 = scalar_select %p131, %s130, 2
    %s133 = scalar_lea.vmem %s3, %s132
    %s134 = smul.u32 0, 3
    %s135 = ssub.s32 %s134, 1
    %p136 = scmp.gt.s32.totalorder %s135, 0
    %s137 = scalar_select %p136, %s135, 0
    %s138 = sadd.s32 0, 1
    %s139 = smul.u32 %s138, 3
    %p140 = scmp.lt.s32.totalorder %s139, 2
    %s141 = scalar_select %p140, %s139, 2
    %p142 = scmp.lt.s32.totalorder %s141, 2
    %s143 = scalar_select %p142, %s141, 2
    %s144 = scalar_lea.vmem %s5, %s143
    %s145 = sadd.s32 0, 1
    %s146 = smul.u32 %s145, 3
    %p147 = scmp.lt.s32.totalorder %s146, 2
    %s148 = scalar_select %p147, %s146, 2
    %v149 = vld [vmem:[%s4] sm:$0x7]
    %p150 = scmp.gt.s32.totalorder 0, 0
    %v151 = vld [vmem:[%s133] sm:$0x1]
    %s152 = scalar_select %p150, 1, 0
    %v153 = vstv %s152
    %vm154 = vcmp.eq.s32.totalorder %v153, 1
    %v155 = vsel %vm154, %v151, 4294967295
    %p156 = scmp.lt.s32.totalorder 0, 0
    %v157 = vld [vmem:[%s144] sm:$0x1]
    %s158 = scalar_select %p156, 1, 0
    %v159 = vstv %s158
    %vm160 = vcmp.eq.s32.totalorder %v159, 1
    %v161 = vsel %vm160, %v157, 4294967295
    %v162 = vld [vmem:[%s6] sm:$0xff]
    %v163 = vld [vmem:[#allocation5] sm:$0xff]
    %v164 = vld [vmem:[#allocation5 + $0x8] sm:$0xff]
    %v165 = vld [vmem:[#allocation5 + $0x10] sm:$0xff]
    %167 = vset.pattern.permute.xlu0 1
    %168 = vperm.xlu0 %167, %v162
    %v169 = vpop.permute.xlu0 %168
    %v171 = vmul.f32 %v163, %v169
    %v172 = vmul.f32 %v164, %v169
    %v173 = vmul.f32 %v165, %v169
    %v174 = vld [vmem:[#allocation2] sm:$0xff]
    %v175 = vld [vmem:[#allocation7] sm:$0xff]
    %v176 = vperm.slane %v149, 0
    %v177 = vperm.slane %v149, 1
    %v178 = vperm.slane %v149, 2
    %179 = vrot.lane.b32.xlu0 %v176, 127
    %v180 = vpop.permute.xlu0 %179
    %181 = vrot.lane.b32.xlu0 %v177, 127
    %v182 = vpop.permute.xlu0 %181
    %183 = vrot.lane.b32.xlu0 %v178, 127
    %v184 = vpop.permute.xlu0 %183
    %vm185 = vcmask 1039360
    %v186 = vsel %vm185, %v180, %v182
    %v187 = vsel %vm185, %v182, %v184
    %vm188 = vcmp.eq.s32.totalorder %v155, %v180
    %vm189 = vcmp.eq.s32.totalorder %v176, %v186
    %vm190 = vcmp.eq.s32.totalorder %v177, %v187
    %vm191 = vcmp.eq.s32.totalorder %v178, %v184
    %v192 = vsel %vm188, 1, 0
    %v193 = vsel %vm189, 1, 0
    %v194 = vsel %vm190, 1, 0
    %v195 = vsel %vm191, 1, 0
    %v196 = vcvt.s32.f32 %v192
    %v197 = vcvt.s32.f32 %v193
    %v198 = vcvt.s32.f32 %v194
    %v199 = vcvt.s32.f32 %v195
    %v200 = vperm.slane %v196, 0
    %v201 = vperm.slane %v197, 0
    %v202 = vperm.slane %v198, 0
    %v203 = vperm.slane %v199, 0
    %v204 = vmul.f32 %v174, %v200
    %v205 = vmul.f32 %v163, %v201
    %v206 = vmul.f32 %v164, %v202
    %v207 = vmul.f32 %v165, %v203
    %208 = vset.pattern.permute.xlu0 0
    %209 = vperm.xlu0 %208, %v162
    %v210 = vpop.permute.xlu0 %209
    %v212 = vmul.f32 %v204, %v210
    %v213 = vmul.f32 %v205, %v210
    %v214 = vmul.f32 %v206, %v210
    %v215 = vmul.f32 %v207, %v210
    %220 = vrot.lane.b32.xlu0 %v212, 1
    %v221 = vpop.permute.xlu0 %220
    %222 = vrot.lane.b32.xlu0 %v213, 1
    %v223 = vpop.permute.xlu0 %222
    %224 = vrot.lane.b32.xlu0 %v214, 1
    %v225 = vpop.permute.xlu0 %224
    %226 = vrot.lane.b32.xlu0 %v215, 1
    %v227 = vpop.permute.xlu0 %226
    %vm228 = vcmask 7168
    %v229 = vsel %vm228, %v221, %v223
    %v230 = vsel %vm228, %v223, %v225
    %v231 = vsel %vm228, %v225, %v227
    %v235 = vadd.f32 %v171, %v229
    %v236 = vadd.f32 %v172, %v230
    %v237 = vadd.f32 %v173, %v231
    %238 = vrot.lane.b32.xlu0 %v176, 1
    %v239 = vpop.permute.xlu0 %238
    %240 = vrot.lane.b32.xlu0 %v177, 1
    %v241 = vpop.permute.xlu0 %240
    %242 = vrot.lane.b32.xlu0 %v178, 1
    %v243 = vpop.permute.xlu0 %242
    %v244 = vsel %vm228, %v239, %v241
    %v245 = vsel %vm228, %v241, %v243
    %vm246 = vcmp.eq.s32.totalorder %v176, %v239
    %vm247 = vcmp.eq.s32.totalorder %v177, %v244
    %vm248 = vcmp.eq.s32.totalorder %v178, %v245
    %vm249 = vcmp.eq.s32.totalorder %v161, %v243
    %v250 = vsel %vm246, 1, 0
    %v251 = vsel %vm247, 1, 0
    %v252 = vsel %vm248, 1, 0
    %v253 = vsel %vm249, 1, 0
    %v254 = vcvt.s32.f32 %v250
    %v255 = vcvt.s32.f32 %v251
    %v256 = vcvt.s32.f32 %v252
    %v257 = vcvt.s32.f32 %v253
    %v258 = vperm.slane %v254, 0
    %v259 = vperm.slane %v255, 0
    %v260 = vperm.slane %v256, 0
    %v261 = vperm.slane %v257, 0
    %v262 = vmul.f32 %v163, %v258
    %v263 = vmul.f32 %v164, %v259
    %v264 = vmul.f32 %v165, %v260
    %v265 = vmul.f32 %v175, %v261
    %266 = vset.pattern.permute.xlu0 2
    %267 = vperm.xlu0 %266, %v162
    %v268 = vpop.permute.xlu0 %267
    %v270 = vmul.f32 %v262, %v268
    %v271 = vmul.f32 %v263, %v268
    %v272 = vmul.f32 %v264, %v268
    %v273 = vmul.f32 %v265, %v268
    %278 = vrot.lane.b32.xlu0 %v270, 127
    %v279 = vpop.permute.xlu0 %278
    %280 = vrot.lane.b32.xlu0 %v271, 127
    %v281 = vpop.permute.xlu0 %280
    %282 = vrot.lane.b32.xlu0 %v272, 127
    %v283 = vpop.permute.xlu0 %282
    %284 = vrot.lane.b32.xlu0 %v273, 127
    %v285 = vpop.permute.xlu0 %284
    %v286 = vsel %vm185, %v279, %v281
    %v287 = vsel %vm185, %v281, %v283
    %v288 = vsel %vm185, %v283, %v285
    %v292 = vadd.f32 %v235, %v286
    %v293 = vadd.f32 %v236, %v287
    %v294 = vadd.f32 %v237, %v288
    %v295 = vld [vmem:[%s7] sm:$0xff]
    %297 = vset.pattern.permute.xlu0 0
    %298 = vperm.xlu0 %297, %v295
    %v299 = vpop.permute.xlu0 %298
    %v301 = vadd.f32 %v292, %v299
    %v302 = vadd.f32 %v293, %v299
    %v303 = vadd.f32 %v294, %v299
    %304 = vst [vmem:[#allocation8] sm:$0xff] %v301
    %305 = vst [vmem:[#allocation8 + $0x8] sm:$0xff] %v302
    %306 = vst [vmem:[#allocation8 + $0x10] sm:$0xff] %v303
    // Predicated region
    $region46: #{tpu_custom_call.1} parent=1 // pred_check
      _
    $region47: #{tpu_custom_call.1} parent=1 // pred_check_branch
      %308 = sbr.rel (0) target = $region49
    $region48: #{tpu_custom_call.1} parent=1 // pred_region
      %310 = vsyncadd [#allocation4], 0
      %s312 = sshll.u32 [#allocation8], 4
      %s313 = int_to_ptr.vmem [resolvable:$true] %s312
      %s314 = sshll.u32 %s8, 4
      %s315 = int_to_ptr.hbm [resolvable:$true] %s314
      %317 = dma.vmem_to_hbm [thread:$0]  %s313, 384, %s315, [#allocation4]
    $region49: #{tpu_custom_call.1} parent=1 // pred_fallthru
      _
    // Predicated region
    $region50: #{tpu_custom_call.1} parent=1 // pred_check
      _
    $region51: #{tpu_custom_call.1} parent=1 // pred_check_branch
      %319 = sbr.rel (0) target = $region53
    $region52: #{tpu_custom_call.1} parent=1 // pred_region
      %321 = dma.done [#allocation4], 384
    $region53: #{tpu_custom_call.1} parent=1 // pred_fallthru
      _
    %322 = vsyncpa [#allocation3], 1
    %323 = vsyncpa [#allocation6], 1
    %324 = vsyncpa [#allocation4], 1

</llo_original>
